<compile_context>
chip_gen: v6e
topology: v6e:2x2x1
jax: 0.10.0
libtpu: 0.0.40
codegen_flags: <defaults>
</compile_context>

<pallas_src>
import functools

import jax
import jax.numpy as jnp
from jax.experimental import pallas as pl
from jax.experimental.pallas import tpu as pltpu

_LANE = 128
_SUBLANE = 8


def _round_up(x, m):
    return ((x + m - 1) // m) * m


def _focal_neg_soft_kernel(pred_ref, tgt_ref, out_ref, *, alpha, gamma):
    """One (tile_r, 128) block -> one (1, 8, 128) lane-dense partial sum."""
    x = pred_ref[...].astype(jnp.float32)          # (tile_r, 128)
    t = tgt_ref[...].astype(jnp.float32)           # (tile_r, 128)

    # weight: 1-alpha where target == 0, alpha where target > 1e-5, else 0
    w = jnp.where(t == 0.0, jnp.float32(1.0 - alpha), jnp.float32(0.0))
    w = jnp.where(t > 1e-5, jnp.float32(alpha), w)

    # Numerically stable sigmoid / log-sigmoid sharing one exp(-|x|) (EUP slot).
    neg_abs = -jnp.abs(x)
    e = jnp.exp(neg_abs)                           # in (0, 1]
    log1pe = jnp.log(1.0 + e)
    log_sig = jnp.minimum(x, 0.0) - log1pe         # log(sigmoid(x))
    log_sig_inv = jnp.minimum(-x, 0.0) - log1pe    # log(sigmoid(-x))
    inv = 1.0 / (1.0 + e)
    sig = jnp.where(x >= 0.0, inv, e * inv)        # sigmoid(x), overflow-free

    # |sigmoid(x) - t| ** gamma  (0 ** gamma == 0 for gamma > 0)
    adiff = jnp.abs(sig - t)
    powed = jnp.where(
        adiff > 0.0,
        jnp.exp(jnp.float32(gamma) * jnp.log(jnp.maximum(adiff, 1e-30))),
        jnp.float32(0.0),
    )

    elem = (w * powed) * (t * log_sig + (1.0 - t) * log_sig_inv)

    # Lane-dense partial sum: (tile_r, 128) -> (8, 128); the reshape keeps the
    # trailing (8, 128) tiles so it is layout-free, then a grouped sublane sum.
    tile_r = elem.shape[0]
    part = jnp.sum(elem.reshape(tile_r // _SUBLANE, _SUBLANE, _LANE), axis=0)
    out_ref[...] = part[None]                      # (1, 8, 128)


def focal_loss_with_logits_neg_soft(pred, target, alpha, gamma,
                                    *, max_tile_rows=4096):
    """Pallas wrapper. pred/target: same arbitrary shape. Returns scalar f32."""
    assert pred.shape == target.shape
    p = pred.reshape(-1)
    t = target.reshape(-1)
    n = p.shape[0]

    rows = -(-n // _LANE)                                   # ceil
    num_tiles = max(1, -(-rows // int(max_tile_rows)))      # balanced tiles
    tile_r = _round_up(-(-rows // num_tiles), _SUBLANE)
    rows_p = num_tiles * tile_r
    n_pad = rows_p * _LANE - n

    # Pad: target sentinel 1e-6 -> weight == 0 -> padded elements contribute 0.
    p = jnp.pad(p, (0, n_pad), constant_values=0.0).reshape(rows_p, _LANE)
    t = jnp.pad(t, (0, n_pad), constant_values=1e-6).reshape(rows_p, _LANE)

    kernel = functools.partial(
        _focal_neg_soft_kernel, alpha=float(alpha), gamma=float(gamma)
    )

    partials = pl.pallas_call(
        kernel,
        out_shape=jax.ShapeDtypeStruct((num_tiles, _SUBLANE, _LANE), jnp.float32),
        grid_spec=pltpu.PrefetchScalarGridSpec(
            num_scalar_prefetch=0,
            grid=(num_tiles,),
            in_specs=[
                pl.BlockSpec((tile_r, _LANE), lambda i: (i, 0)),
                pl.BlockSpec((tile_r, _LANE), lambda i: (i, 0)),
            ],
            out_specs=pl.BlockSpec((1, _SUBLANE, _LANE), lambda i: (i, 0, 0)),
        ),
        compiler_params=pltpu.CompilerParams(
            # Independent per-tile partial sums -> megacore-shardable on v7x.
            dimension_semantics=("parallel",),
            # Raised vs default, but sized to stay safe on v7x's 64 MiB VMEM
            # (actual use: 2 inputs x 2 buffers x <=2 MiB = 8 MiB + tiny output).
            vmem_limit_bytes=48 * 1024 * 1024,
        ),
    )(p, t)

    # loss = -(coef * elem).sum(); final tiny reduction + negation in the wrapper.
    return -jnp.sum(partials)


def _reference(pred, target, alpha, gamma):
    weight = jnp.where(target == 0.0, 1.0 - alpha, 0.0)
    weight = jnp.where(target > 1e-5, alpha, weight)
    sig = jax.nn.sigmoid(pred)
    ls = jax.nn.log_sigmoid(pred)
    lsi = jax.nn.log_sigmoid(-pred)
    coef = weight * jnp.power(jnp.abs(sig - target), gamma)
    loss = target * ls + (1.0 - target) * lsi
    return -jnp.sum(coef * loss)


if __name__ == "__main__":
    key = jax.random.PRNGKey(0)
    k_pred, k_tgt = jax.random.split(key)

    shape = (2, 4, 16, 16)          # batch=2, channels=4, 16x16 spatial
    alpha, gamma = 0.25, 2.0        # module __init__ args

    pred = jax.random.normal(k_pred, shape, dtype=jnp.float32)
    # Multi-hot 0/1 targets (soft targets are also supported by the kernel).
    target = jax.random.bernoulli(k_tgt, p=0.3, shape=shape).astype(jnp.float32)

    out = focal_loss_with_logits_neg_soft(pred, target, alpha, gamma)
    out = jax.block_until_ready(out)

    ref = _reference(pred, target, alpha, gamma)
    assert jnp.allclose(out, ref, rtol=1e-4, atol=1e-4), (out, ref)

    print("KERNEL_OK")
</pallas_src>

<mosaic_0001>
module attributes {stable_mosaic.version = 11 : i64} {
  func.func @_focal_neg_soft_kernel(%arg0: i32, %arg1: memref<16x128xf32, #tpu.memory_space<vmem>>, %arg2: memref<16x128xf32, #tpu.memory_space<vmem>>, %arg3: memref<1x8x128xf32, #tpu.memory_space<vmem>>) attributes {dimension_semantics = [#tpu.dimension_semantics<parallel>], iteration_bounds = array<i64: 1>, scalar_prefetch = 0 : i64, scratch_operands = 0 : i64, tpu.core_type = #tpu.core_type<tc>, window_params = [{transform_indices = @transform_0, window_bounds = array<i64: 16, 128>}, {transform_indices = @transform_1, window_bounds = array<i64: 16, 128>}, {transform_indices = @transform_2, window_bounds = array<i64: 1, 8, 128>}]} {
    %c0 = arith.constant 0 : index
    %c0_0 = arith.constant 0 : index
    %0 = vector.load %arg1[%c0, %c0_0] : memref<16x128xf32, #tpu.memory_space<vmem>>, vector<16x128xf32>
    %c0_1 = arith.constant 0 : index
    %c0_2 = arith.constant 0 : index
    %1 = vector.load %arg2[%c0_1, %c0_2] : memref<16x128xf32, #tpu.memory_space<vmem>>, vector<16x128xf32>
    %cst = arith.constant 0.000000e+00 : f32
    %2 = vector.broadcast %cst : f32 to vector<16x128xf32>
    %3 = arith.cmpf oeq, %1, %2 : vector<16x128xf32>
    %cst_3 = arith.constant 7.500000e-01 : f32
    %cst_4 = arith.constant 0.000000e+00 : f32
    %4 = vector.broadcast %cst_3 : f32 to vector<16x128xf32>
    %5 = vector.broadcast %cst_4 : f32 to vector<16x128xf32>
    %6 = arith.select %3, %4, %5 : vector<16x128xi1>, vector<16x128xf32>
    %cst_5 = arith.constant 9.99999974E-6 : f32
    %7 = vector.broadcast %cst_5 : f32 to vector<16x128xf32>
    %8 = arith.cmpf ogt, %1, %7 : vector<16x128xf32>
    %cst_6 = arith.constant 2.500000e-01 : f32
    %9 = vector.broadcast %cst_6 : f32 to vector<16x128xf32>
    %10 = arith.select %8, %9, %6 : vector<16x128xi1>, vector<16x128xf32>
    %11 = math.absf %0 : vector<16x128xf32>
    %cst_7 = arith.constant 0.000000e+00 : f32
    %12 = vector.broadcast %cst_7 : f32 to vector<16x128xf32>
    %13 = arith.subf %12, %11 : vector<16x128xf32>
    %14 = math.exp %13 : vector<16x128xf32>
    %cst_8 = arith.constant 1.000000e+00 : f32
    %15 = vector.broadcast %cst_8 : f32 to vector<16x128xf32>
    %16 = arith.addf %15, %14 : vector<16x128xf32>
    %17 = math.log %16 : vector<16x128xf32>
    %cst_9 = arith.constant 0.000000e+00 : f32
    %18 = vector.broadcast %cst_9 : f32 to vector<16x128xf32>
    %19 = arith.minimumf %0, %18 : vector<16x128xf32>
    %20 = arith.subf %19, %17 : vector<16x128xf32>
    %cst_10 = arith.constant 0.000000e+00 : f32
    %21 = vector.broadcast %cst_10 : f32 to vector<16x128xf32>
    %22 = arith.subf %21, %0 : vector<16x128xf32>
    %cst_11 = arith.constant 0.000000e+00 : f32
    %23 = vector.broadcast %cst_11 : f32 to vector<16x128xf32>
    %24 = arith.minimumf %22, %23 : vector<16x128xf32>
    %25 = arith.subf %24, %17 : vector<16x128xf32>
    %cst_12 = arith.constant 1.000000e+00 : f32
    %26 = vector.broadcast %cst_12 : f32 to vector<16x128xf32>
    %27 = arith.addf %26, %14 : vector<16x128xf32>
    %cst_13 = arith.constant 1.000000e+00 : f32
    %28 = vector.broadcast %cst_13 : f32 to vector<16x128xf32>
    %29 = arith.divf %28, %27 : vector<16x128xf32>
    %cst_14 = arith.constant 0.000000e+00 : f32
    %30 = vector.broadcast %cst_14 : f32 to vector<16x128xf32>
    %31 = arith.cmpf oge, %0, %30 : vector<16x128xf32>
    %32 = arith.mulf %14, %29 : vector<16x128xf32>
    %33 = arith.select %31, %29, %32 : vector<16x128xi1>, vector<16x128xf32>
    %34 = arith.subf %33, %1 : vector<16x128xf32>
    %35 = math.absf %34 : vector<16x128xf32>
    %cst_15 = arith.constant 0.000000e+00 : f32
    %36 = vector.broadcast %cst_15 : f32 to vector<16x128xf32>
    %37 = arith.cmpf ogt, %35, %36 : vector<16x128xf32>
    %cst_16 = arith.constant 1.000000e-30 : f32
    %38 = vector.broadcast %cst_16 : f32 to vector<16x128xf32>
    %39 = arith.maximumf %35, %38 : vector<16x128xf32>
    %40 = math.log %39 : vector<16x128xf32>
    %cst_17 = arith.constant 2.000000e+00 : f32
    %41 = vector.broadcast %cst_17 : f32 to vector<16x128xf32>
    %42 = arith.mulf %41, %40 : vector<16x128xf32>
    %43 = math.exp %42 : vector<16x128xf32>
    %cst_18 = arith.constant 0.000000e+00 : f32
    %44 = vector.broadcast %cst_18 : f32 to vector<16x128xf32>
    %45 = arith.select %37, %43, %44 : vector<16x128xi1>, vector<16x128xf32>
    %46 = arith.mulf %10, %45 : vector<16x128xf32>
    %47 = arith.mulf %1, %20 : vector<16x128xf32>
    %cst_19 = arith.constant 1.000000e+00 : f32
    %48 = vector.broadcast %cst_19 : f32 to vector<16x128xf32>
    %49 = arith.subf %48, %1 : vector<16x128xf32>
    %50 = arith.mulf %49, %25 : vector<16x128xf32>
    %51 = arith.addf %47, %50 : vector<16x128xf32>
    %52 = arith.mulf %46, %51 : vector<16x128xf32>
    %53 = vector.shape_cast %52 : vector<16x128xf32> to vector<2x8x128xf32>
    %cst_20 = arith.constant dense<0.000000e+00> : vector<8x128xf32>
    %54 = vector.multi_reduction <add>, %53, %cst_20 [0] : vector<2x8x128xf32> to vector<8x128xf32>
    %55 = vector.shape_cast %54 : vector<8x128xf32> to vector<1x8x128xf32>
    %c0_21 = arith.constant 0 : index
    %c0_22 = arith.constant 0 : index
    %c0_23 = arith.constant 0 : index
    %56 = vector.load %arg3[%c0_21, %c0_22, %c0_23] : memref<1x8x128xf32, #tpu.memory_space<vmem>>, vector<1x8x128xf32>
    tpu.vector_store %arg3[%c0_21, %c0_22, %c0_23], %55 {strides = array<i32>} : memref<1x8x128xf32, #tpu.memory_space<vmem>>, vector<1x8x128xf32>,
    return
  }
  func.func @transform_0(%arg0: i32) -> (i32, i32) {
    %c0_i32 = arith.constant 0 : i32
    %c0_i32_0 = arith.constant 0 : i32
    return %arg0, %c0_i32 : i32, i32
  }
  func.func @transform_1(%arg0: i32) -> (i32, i32) {
    %c0_i32 = arith.constant 0 : i32
    %c0_i32_0 = arith.constant 0 : i32
    return %arg0, %c0_i32 : i32, i32
  }
  func.func @transform_2(%arg0: i32) -> (i32, i32, i32) {
    %c0_i32 = arith.constant 0 : i32
    %c0_i32_0 = arith.constant 0 : i32
    %c0_i32_1 = arith.constant 0 : i32
    return %arg0, %c0_i32, %c0_i32_0 : i32, i32, i32
  }
}

</mosaic_0001>

<llo_original>
// kernel: tpu_custom_call.1
$region0: #{tpu_custom_call.1}
  #allocation0 [shape = 'u32[]', space=smem, size = 0x4, offset = 0x4, fixed_abs, tag = 'smem constant byte address 0x4 - core index']
  #allocation1 [shape = 'u32[144,128]{1,0:T(1,128)}', space=vmem, size = 0x12000, scoped, tag = 'internal scratch']
  %s0 = inlined_call_operand.hbm [shape: f32[16,128], index: 0, kind: input, shape index: {}]
  %s1 = inlined_call_operand.hbm [shape: f32[16,128], index: 1, kind: input, shape index: {}]
  %s2 = inlined_call_operand.hbm [shape: f32[1,8,128], index: 2, kind: output, shape index: {}]
  %s3 = sld [smem:[#allocation0]]
  $region26: #{tpu_custom_call.1} parent=0
    _
  %s5 = ssub.s32 1, %s3
  %s6 = scalar_select 0, %s5, %s3
  $region1: #{tpu_custom_call.1} parent=0
    #allocation2 [shape = 'u8[8192]{0}', space=vmem, size = 0x2000, scoped, tag = 'input window, operand 0, single buffered']
    #allocation3 [shape = 's32[1]{0}', space=sflag, size = 0x4, scoped, tag = 'scoped memory for tpu_custom_call.1']
    #allocation4 [shape = 's32[1]{0}', space=sflag, size = 0x4, scoped, tag = 'scoped memory for tpu_custom_call.1']
    #allocation5 [shape = 'u8[8192]{0}', space=vmem, size = 0x2000, scoped, tag = 'input window, operand 1, single buffered']
    #allocation6 [shape = 's32[1]{0}', space=sflag, size = 0x4, scoped, tag = 'scoped memory for tpu_custom_call.1']
    #allocation7 [shape = 'u8[4096]{0}', space=vmem, size = 0x1000, scoped, tag = 'output window, operand 0, single buffered']
    %7 = vsyncpa [#allocation3], 0
    %8 = vsyncpa [#allocation6], 0
    %9 = vsyncpa [#allocation4], 0
    // Predicated region
    $region2: #{tpu_custom_call.1} parent=1 // pred_check
      _
    $region3: #{tpu_custom_call.1} parent=1 // pred_check_branch
      %11 = sbr.rel (0) target = $region5
    $region4: #{tpu_custom_call.1} parent=1 // pred_region
      %s13 = ssub.s32 256, 256
      %14 = vsyncadd [#allocation3], %s13
      %s15 = sshll.u32 [#allocation2], 4
      %s16 = int_to_ptr.vmem [resolvable:$true] %s15
      %21 = dma.hbm_to_vmem [thread:$0]  %s0, 256, %s16, [#allocation3], 128, 128, 8
    $region5: #{tpu_custom_call.1} parent=1 // pred_fallthru
      _
    // Predicated region
    $region6: #{tpu_custom_call.1} parent=1 // pred_check
      _
    $region7: #{tpu_custom_call.1} parent=1 // pred_check_branch
      %23 = sbr.rel (0) target = $region9
    $region8: #{tpu_custom_call.1} parent=1 // pred_region
      %s25 = ssub.s32 256, 256
      %26 = vsyncadd [#allocation6], %s25
      %s27 = sshll.u32 [#allocation5], 4
      %s28 = int_to_ptr.vmem [resolvable:$true] %s27
      %33 = dma.hbm_to_vmem [thread:$0]  %s1, 256, %s28, [#allocation6], 128, 128, 8
    $region9: #{tpu_custom_call.1} parent=1 // pred_fallthru
      _
    // Predicated region
    $region10: #{tpu_custom_call.1} parent=1 // pred_check
      _
    $region11: #{tpu_custom_call.1} parent=1 // pred_check_branch
      %35 = sbr.rel (0) target = $region13
    $region12: #{tpu_custom_call.1} parent=1 // pred_region
      %36 = dma.done [#allocation3], 256
    $region13: #{tpu_custom_call.1} parent=1 // pred_fallthru
      _
    // Predicated region
    $region14: #{tpu_custom_call.1} parent=1 // pred_check
      _
    $region15: #{tpu_custom_call.1} parent=1 // pred_check_branch
      %38 = sbr.rel (0) target = $region17
    $region16: #{tpu_custom_call.1} parent=1 // pred_region
      %39 = dma.done [#allocation6], 256
    $region17: #{tpu_custom_call.1} parent=1 // pred_fallthru
      _
    %v40 = vld [vmem:[#allocation2] sm:$0xff]
    %v41 = vld [vmem:[#allocation2 + $0x8] sm:$0xff]
    %v42 = vld [vmem:[#allocation5] sm:$0xff]
    %v43 = vld [vmem:[#allocation5 + $0x8] sm:$0xff]
    %vm44 = vcmp.eq.f32.partialorder %v42, 0.0
    %vm45 = vcmp.eq.f32.partialorder %v43, 0.0
    %v46 = vsel %vm44, 0.75, 0.0
    %v47 = vsel %vm45, 0.75, 0.0
    %vm48 = vcmp.gt.f32.partialorder %v42, 1e-05
    %vm49 = vcmp.gt.f32.partialorder %v43, 1e-05
    %v50 = vsel %vm48, 0.25, %v46
    %v51 = vsel %vm49, 0.25, %v47
    %v52 = vand.u32 2147483647, %v40
    %v53 = vand.u32 2147483647, %v41
    %v54 = vsub.f32 0.0, %v52
    %v55 = vsub.f32 0.0, %v53
    %v56 = vmul.f32 %v54, 1.442695
    %v57 = vpow.pop %v56
    %v58 = vmul.f32 %v55, 1.442695
    %v59 = vpow.pop %v58
    %v60 = vadd.f32 %v57, 1.0
    %v61 = vadd.f32 %v59, 1.0
    %v62 = vlog2.pop %v60
    %v63 = vmul.f32 %v62, 0.6931472
    %v64 = vlog2.pop %v61
    %v65 = vmul.f32 %v64, 0.6931472
    %v66 = vmin.f32 %v40, 0.0
    %v67 = vmin.f32 %v41, 0.0
    %v68 = vsub.f32 %v66, %v63
    %v69 = vsub.f32 %v67, %v65
    %v70 = vsub.f32 0.0, %v40
    %v71 = vsub.f32 0.0, %v41
    %v72 = vmin.f32 %v70, 0.0
    %v73 = vmin.f32 %v71, 0.0
    %v74 = vsub.f32 %v72, %v63
    %v75 = vsub.f32 %v73, %v65
    %v76 = vrcp.pop %v60
    %v77 = vmul.f32 1.0, %v76
    %v78 = vrcp.pop %v61
    %v79 = vmul.f32 1.0, %v78
    %vm80 = vcmp.ge.f32.partialorder %v40, 0.0
    %vm81 = vcmp.ge.f32.partialorder %v41, 0.0
    %v82 = vmul.f32 %v57, %v77
    %v83 = vmul.f32 %v59, %v79
    %v84 = vsel %vm80, %v77, %v82
    %v85 = vsel %vm81, %v79, %v83
    %v86 = vsub.f32 %v84, %v42
    %v87 = vsub.f32 %v85, %v43
    %v88 = vand.u32 2147483647, %v86
    %v89 = vand.u32 2147483647, %v87
    %vm90 = vcmp.gt.f32.partialorder %v88, 0.0
    %vm91 = vcmp.gt.f32.partialorder %v89, 0.0
    %v92 = vmax.f32 %v88, 1e-30
    %v93 = vmax.f32 %v89, 1e-30
    %v94 = vlog2.pop %v92
    %v95 = vmul.f32 %v94, 0.6931472
    %v96 = vlog2.pop %v93
    %v97 = vmul.f32 %v96, 0.6931472
    %v98 = vmul.f32 %v95, 2.0
    %v99 = vmul.f32 %v97, 2.0
    %v100 = vmul.f32 %v98, 1.442695
    %v101 = vpow.pop %v100
    %v102 = vmul.f32 %v99, 1.442695
    %v103 = vpow.pop %v102
    %v104 = vsel %vm90, %v101, 0.0
    %v105 = vsel %vm91, %v103, 0.0
    %v106 = vmul.f32 %v50, %v104
    %v107 = vmul.f32 %v51, %v105
    %v108 = vmul.f32 %v42, %v68
    %v109 = vmul.f32 %v43, %v69
    %v110 = vsub.f32 1.0, %v42
    %v111 = vsub.f32 1.0, %v43
    %v112 = vmul.f32 %v110, %v74
    %v113 = vmul.f32 %v111, %v75
    %v114 = vadd.f32 %v108, %v112
    %v115 = vadd.f32 %v109, %v113
    %v116 = vmul.f32 %v106, %v114
    %v117 = vmul.f32 %v107, %v115
    %v118 = vadd.f32 %v116, %v117
    %119 = vst [vmem:[#allocation7] sm:$0xff] %v118
    // Predicated region
    $region18: #{tpu_custom_call.1} parent=1 // pred_check
      _
    $region19: #{tpu_custom_call.1} parent=1 // pred_check_branch
      %121 = sbr.rel (0) target = $region21
    $region20: #{tpu_custom_call.1} parent=1 // pred_region
      %s123 = ssub.s32 128, 128
      %124 = vsyncadd [#allocation4], %s123
      %s126 = sshll.u32 [#allocation7], 4
      %s127 = int_to_ptr.vmem [resolvable:$true] %s126
      %129 = dma.vmem_to_hbm [thread:$0]  %s127, 128, %s2, [#allocation4]
    $region21: #{tpu_custom_call.1} parent=1 // pred_fallthru
      _
    // Predicated region
    $region22: #{tpu_custom_call.1} parent=1 // pred_check
      _
    $region23: #{tpu_custom_call.1} parent=1 // pred_check_branch
      %131 = sbr.rel (0) target = $region25
    $region24: #{tpu_custom_call.1} parent=1 // pred_region
      %132 = dma.done [#allocation4], 128
    $region25: #{tpu_custom_call.1} parent=1 // pred_fallthru
      _
    %133 = vsyncpa [#allocation3], 1
    %134 = vsyncpa [#allocation6], 1
    %135 = vsyncpa [#allocation4], 1

</llo_original>
